<compile_context>
chip_gen: v7x
topology: tpu7x:2x2x1
jax: 0.10.0
libtpu: 0.0.40
codegen_flags: <defaults>
</compile_context>

<pallas_src>
import functools

import jax
import jax.numpy as jnp
from jax.experimental import pallas as pl
from jax.experimental.pallas import tpu as pltpu


_VMEM_LIMIT = 32 * 1024 * 1024  # safe on v5e/v6e/v7x; blocks here are tiny anyway


def _cparams(n_axes):
    return pltpu.CompilerParams(
        dimension_semantics=("parallel",) * n_axes,
        vmem_limit_bytes=_VMEM_LIMIT,
    )


def _pick_tile_m(M, target=256):
    """Largest row tile <= target that divides M (avoids the tile_m=M blowup for big M)."""
    if M <= target:
        return M
    for t in range(target, 7, -8):
        if M % t == 0:
            return t
    return M


# -----------------------------------------------------------------------------
# Pallas kernels
# -----------------------------------------------------------------------------
def _matmul_bias_kernel(x_ref, w_ref, b_ref, o_ref, *, activation):
    acc = jnp.dot(
        x_ref[...].astype(jnp.bfloat16),
        w_ref[...].astype(jnp.bfloat16),
        preferred_element_type=jnp.float32,
    ) + b_ref[...]
    if activation == "gelu":
        # TODO(synk): torch nn.GELU uses exact erf; tanh approximation used here.
        acc = jax.nn.gelu(acc, approximate=True)
    o_ref[...] = acc.astype(o_ref.dtype)


def matmul_bias(x, w, b, activation=None):
    """(M, K) @ (K, N) + b, optional fused GELU. Big M-tiles, bf16 MXU feed."""
    M, K = x.shape
    N = w.shape[1]
    tm = _pick_tile_m(M)
    return pl.pallas_call(
        functools.partial(_matmul_bias_kernel, activation=activation),
        out_shape=jax.ShapeDtypeStruct((M, N), jnp.float32),
        grid=(M // tm,),
        in_specs=[
            pl.BlockSpec((tm, K), lambda i: (i, 0)),
            pl.BlockSpec((K, N), lambda i: (0, 0)),
            pl.BlockSpec((1, N), lambda i: (0, 0)),
        ],
        out_specs=pl.BlockSpec((tm, N), lambda i: (i, 0)),
        compiler_params=_cparams(1),
    )(x, w, b.reshape(1, N))


def _matmul_bias_ln_kernel(x_ref, w_ref, b_ref, g_ref, bt_ref, o_ref, *, eps):
    acc = jnp.dot(
        x_ref[...].astype(jnp.bfloat16),
        w_ref[...].astype(jnp.bfloat16),
        preferred_element_type=jnp.float32,
    ) + b_ref[...]
    mean = jnp.mean(acc, axis=-1, keepdims=True)
    var = jnp.mean((acc - mean) ** 2, axis=-1, keepdims=True)
    y = (acc - mean) * jax.lax.rsqrt(var + eps)
    o_ref[...] = (y * g_ref[...] + bt_ref[...]).astype(o_ref.dtype)


def matmul_bias_ln(x, w, b, gamma, beta, eps=1e-5):
    """Fused (x @ w + b) followed by LayerNorm over the output dim (PatchEmbed)."""
    M, K = x.shape
    N = w.shape[1]
    tm = _pick_tile_m(M)
    return pl.pallas_call(
        functools.partial(_matmul_bias_ln_kernel, eps=eps),
        out_shape=jax.ShapeDtypeStruct((M, N), jnp.float32),
        grid=(M // tm,),
        in_specs=[
            pl.BlockSpec((tm, K), lambda i: (i, 0)),
            pl.BlockSpec((K, N), lambda i: (0, 0)),
            pl.BlockSpec((1, N), lambda i: (0, 0)),
            pl.BlockSpec((1, N), lambda i: (0, 0)),
            pl.BlockSpec((1, N), lambda i: (0, 0)),
        ],
        out_specs=pl.BlockSpec((tm, N), lambda i: (i, 0)),
        compiler_params=_cparams(1),
    )(x, w, b.reshape(1, N), gamma.reshape(1, N), beta.reshape(1, N))


def _layernorm_kernel(x_ref, g_ref, b_ref, o_ref, *, eps):
    x = x_ref[...].astype(jnp.float32)
    mean = jnp.mean(x, axis=-1, keepdims=True)
    var = jnp.mean((x - mean) ** 2, axis=-1, keepdims=True)
    y = (x - mean) * jax.lax.rsqrt(var + eps)
    o_ref[...] = (y * g_ref[...] + b_ref[...]).astype(o_ref.dtype)


def layernorm(x, gamma, beta, eps=1e-5):
    """Standalone LayerNorm (only used when there are no transformer blocks)."""
    M, C = x.shape
    tm = _pick_tile_m(M)
    return pl.pallas_call(
        functools.partial(_layernorm_kernel, eps=eps),
        out_shape=jax.ShapeDtypeStruct((M, C), jnp.float32),
        grid=(M // tm,),
        in_specs=[
            pl.BlockSpec((tm, C), lambda i: (i, 0)),
            pl.BlockSpec((1, C), lambda i: (0, 0)),
            pl.BlockSpec((1, C), lambda i: (0, 0)),
        ],
        out_specs=pl.BlockSpec((tm, C), lambda i: (i, 0)),
        compiler_params=_cparams(1),
    )(x, gamma.reshape(1, C), beta.reshape(1, C))


def _ln_matmul_kernel(x_ref, g_ref, bt_ref, w_ref, b_ref, o_ref, *, eps):
    """LayerNorm(x) @ w + b  (norm1 + QKV projection, fused)."""
    x = x_ref[...].astype(jnp.float32)
    mean = jnp.mean(x, axis=-1, keepdims=True)
    var = jnp.mean((x - mean) ** 2, axis=-1, keepdims=True)
    h = (x - mean) * jax.lax.rsqrt(var + eps) * g_ref[...] + bt_ref[...]
    acc = jnp.dot(
        h.astype(jnp.bfloat16),
        w_ref[...].astype(jnp.bfloat16),
        preferred_element_type=jnp.float32,
    ) + b_ref[...]
    o_ref[...] = acc.astype(o_ref.dtype)


def ln_matmul(x, gamma, beta, w, b, eps=1e-5):
    M, C = x.shape
    N = w.shape[1]
    tm = _pick_tile_m(M)
    return pl.pallas_call(
        functools.partial(_ln_matmul_kernel, eps=eps),
        out_shape=jax.ShapeDtypeStruct((M, N), jnp.float32),
        grid=(M // tm,),
        in_specs=[
            pl.BlockSpec((tm, C), lambda i: (i, 0)),
            pl.BlockSpec((1, C), lambda i: (0, 0)),
            pl.BlockSpec((1, C), lambda i: (0, 0)),
            pl.BlockSpec((C, N), lambda i: (0, 0)),
            pl.BlockSpec((1, N), lambda i: (0, 0)),
        ],
        out_specs=pl.BlockSpec((tm, N), lambda i: (i, 0)),
        compiler_params=_cparams(1),
    )(x, gamma.reshape(1, C), beta.reshape(1, C), w, b.reshape(1, N))


def _attn_proj_kernel(qkv_ref, bias_ref, pw_ref, pb_ref, o_ref, *, heads, nW, L, scale):
    """All windows + all heads of one batch image, plus fused output projection."""
    C3 = qkv_ref.shape[-1]
    C = C3 // 3
    hd = C // heads
    qkv = qkv_ref[...]                       # (nW*L, 3C) f32
    bias = bias_ref[...]                     # (1 or nW, heads, L, L) f32
    bias_nw = bias.shape[0]

    head_outs = []
    for h in range(heads):                   # static unrolled loop (heads is small)
        q = qkv[:, h * hd:(h + 1) * hd].reshape(nW, L, hd) * scale
        k = qkv[:, C + h * hd:C + (h + 1) * hd].reshape(nW, L, hd)
        v = qkv[:, 2 * C + h * hd:2 * C + (h + 1) * hd].reshape(nW, L, hd)
        s = jnp.einsum(
            "wqd,wkd->wqk",
            q.astype(jnp.bfloat16),
            k.astype(jnp.bfloat16),
            preferred_element_type=jnp.float32,
        )                                    # (nW, L, L)
        bh = bias[:, h, :, :]
        if bias_nw == 1:
            bh = jnp.broadcast_to(bh, (nW, L, L))
        s = s + bh
        # hand-rolled softmax in f32; denominator via EUP reciprocal.
        s = s - jnp.max(s, axis=-1, keepdims=True)
        e = jnp.exp(s)
        p = e * pl.reciprocal(jnp.sum(e, axis=-1, keepdims=True), approx=True)
        oh = jnp.einsum(
            "wqk,wkd->wqd",
            p.astype(jnp.bfloat16),
            v.astype(jnp.bfloat16),
            preferred_element_type=jnp.float32,
        )                                    # (nW, L, hd)
        head_outs.append(oh.reshape(nW * L, hd))

    out = jnp.concatenate(head_outs, axis=-1)        # heads folded back into lanes: (nW*L, C)
    out = jnp.dot(
        out.astype(jnp.bfloat16),
        pw_ref[...].astype(jnp.bfloat16),
        preferred_element_type=jnp.float32,
    ) + pb_ref[...]
    o_ref[...] = out.astype(o_ref.dtype)


def window_attention_proj(qkv_win, bias, proj_w, proj_b, *, heads, nW, L, scale):
    """qkv_win: (B, nW*L, 3C); bias: (1 or nW, heads, L, L) -> (B, nW*L, C)."""
    B, T, C3 = qkv_win.shape
    C = C3 // 3
    bias_nw = bias.shape[0]
    kernel = functools.partial(_attn_proj_kernel, heads=heads, nW=nW, L=L, scale=scale)
    return pl.pallas_call(
        kernel,
        out_shape=jax.ShapeDtypeStruct((B, T, C), jnp.float32),
        grid=(B,),
        in_specs=[
            pl.BlockSpec((pl.Squeezed(), T, C3), lambda b: (b, 0, 0)),
            pl.BlockSpec((bias_nw, heads, L, L), lambda b: (0, 0, 0, 0)),
            pl.BlockSpec((C, C), lambda b: (0, 0)),
            pl.BlockSpec((1, C), lambda b: (0, 0)),
        ],
        out_specs=pl.BlockSpec((pl.Squeezed(), T, C), lambda b: (b, 0, 0)),
        compiler_params=_cparams(1),
    )(qkv_win, bias, proj_w, proj_b.reshape(1, C))


def _res_ln_mlp_kernel(*refs, eps, fuse_final_ln):
    """y = x + a; y = y + fc2(GELU(fc1(LN(y)))); optionally o = finalLN(y)."""
    if fuse_final_ln:
        (x_ref, a_ref, g_ref, bt_ref, w1_ref, b1_ref, w2_ref, b2_ref,
         fg_ref, fb_ref, o_ref) = refs
    else:
        (x_ref, a_ref, g_ref, bt_ref, w1_ref, b1_ref, w2_ref, b2_ref,
         o_ref) = refs

    y = x_ref[...].astype(jnp.float32) + a_ref[...].astype(jnp.float32)
    mean = jnp.mean(y, axis=-1, keepdims=True)
    var = jnp.mean((y - mean) ** 2, axis=-1, keepdims=True)
    h = (y - mean) * jax.lax.rsqrt(var + eps) * g_ref[...] + bt_ref[...]
    h = jnp.dot(
        h.astype(jnp.bfloat16),
        w1_ref[...].astype(jnp.bfloat16),
        preferred_element_type=jnp.float32,
    ) + b1_ref[...]
    # TODO(synk): torch nn.GELU uses exact erf; tanh approximation used here.
    h = jax.nn.gelu(h, approximate=True)
    h = jnp.dot(
        h.astype(jnp.bfloat16),
        w2_ref[...].astype(jnp.bfloat16),
        preferred_element_type=jnp.float32,
    ) + b2_ref[...]
    y = y + h
    if fuse_final_ln:
        mean = jnp.mean(y, axis=-1, keepdims=True)
        var = jnp.mean((y - mean) ** 2, axis=-1, keepdims=True)
        y = (y - mean) * jax.lax.rsqrt(var + eps) * fg_ref[...] + fb_ref[...]
    o_ref[...] = y.astype(o_ref.dtype)


def res_ln_mlp(x, a, gamma, beta, w1, b1, w2, b2,
               final_gamma=None, final_beta=None, eps=1e-5):
    """Residual + LN2 + MLP + residual, optionally fused with the network's final LN."""
    M, C = x.shape
    H1 = w1.shape[1]
    tm = _pick_tile_m(M)
    fuse = final_gamma is not None

    args = [x, a, gamma.reshape(1, C), beta.reshape(1, C),
            w1, b1.reshape(1, H1), w2, b2.reshape(1, C)]
    in_specs = [
        pl.BlockSpec((tm, C), lambda i: (i, 0)),
        pl.BlockSpec((tm, C), lambda i: (i, 0)),
        pl.BlockSpec((1, C), lambda i: (0, 0)),
        pl.BlockSpec((1, C), lambda i: (0, 0)),
        pl.BlockSpec((C, H1), lambda i: (0, 0)),
        pl.BlockSpec((1, H1), lambda i: (0, 0)),
        pl.BlockSpec((H1, C), lambda i: (0, 0)),
        pl.BlockSpec((1, C), lambda i: (0, 0)),
    ]
    if fuse:
        args += [final_gamma.reshape(1, C), final_beta.reshape(1, C)]
        in_specs += [
            pl.BlockSpec((1, C), lambda i: (0, 0)),
            pl.BlockSpec((1, C), lambda i: (0, 0)),
        ]

    return pl.pallas_call(
        functools.partial(_res_ln_mlp_kernel, eps=eps, fuse_final_ln=fuse),
        out_shape=jax.ShapeDtypeStruct((M, C), jnp.float32),
        grid=(M // tm,),
        in_specs=in_specs,
        out_specs=pl.BlockSpec((tm, C), lambda i: (i, 0)),
        compiler_params=_cparams(1),
    )(*args)


# -----------------------------------------------------------------------------
# JAX glue: window partition / reverse, shift mask, relative position index
# -----------------------------------------------------------------------------
def window_partition(x, ws):
    B, H, W, C = x.shape
    x = x.reshape(B, H // ws, ws, W // ws, ws, C)
    return x.transpose(0, 1, 3, 2, 4, 5).reshape(-1, ws * ws, C)


def window_reverse(xw, ws, B, H, W):
    C = xw.shape[-1]
    x = xw.reshape(B, H // ws, W // ws, ws, ws, C)
    return x.transpose(0, 1, 3, 2, 4, 5).reshape(B, H, W, C)


def relative_position_index(ws):
    coords = jnp.stack(
        jnp.meshgrid(jnp.arange(ws), jnp.arange(ws), indexing="ij")
    )  # (2, ws, ws)
    flat = coords.reshape(2, -1)
    rel = flat[:, :, None] - flat[:, None, :]  # (2, L, L)
    rel = rel.transpose(1, 2, 0) + jnp.array([ws - 1, ws - 1])
    return rel[..., 0] * (2 * ws - 1) + rel[..., 1]  # (L, L)


def shifted_window_mask(H, W, ws, shift):
    img_mask = jnp.zeros((1, H, W, 1), jnp.float32)
    cnt = 0
    for hs in (slice(0, -ws), slice(-ws, -shift), slice(-shift, None)):
        for wsl in (slice(0, -ws), slice(-ws, -shift), slice(-shift, None)):
            img_mask = img_mask.at[:, hs, wsl, :].set(float(cnt))
            cnt += 1
    mw = window_partition(img_mask, ws).reshape(-1, ws * ws)  # (nW, L)
    diff = mw[:, None, :] - mw[:, :, None]
    return jnp.where(diff != 0, -100.0, 0.0)  # (nW, L, L)


def im2col3x3(x):  # (B, H, W, C) -> (B*H*W, 9*C), zero padded
    B, H, W, C = x.shape
    xp = jnp.pad(x, ((0, 0), (1, 1), (1, 1), (0, 0)))
    cols = [xp[:, i: i + H, j: j + W, :] for i in range(3) for j in range(3)]
    return jnp.concatenate(cols, axis=-1).reshape(B * H * W, 9 * C)


# -----------------------------------------------------------------------------
# Parameters (deterministic synthetic init)
# -----------------------------------------------------------------------------
def init_params(key, cfg):
    C = cfg["EMB_DIM"]
    ws = cfg["WIN_SIZE"]
    heads = cfg["HEAD_NUM"][0]
    depth = cfg["DEPTH_EN"][0]
    in_c = cfg["in_chans"]
    out_c = cfg["out_chans"]
    mlp_hidden = int(C * cfg["MLP_RATIO"])

    def dense(k, kin, kout):
        return 0.02 * jax.random.normal(k, (kin, kout), jnp.float32)

    keys = iter(jax.random.split(key, 8 + depth * 8))
    p = {
        "patch_w": dense(next(keys), in_c * cfg["PATCH_SIZE"] ** 2, C),
        "patch_b": jnp.zeros((C,), jnp.float32),
        "patch_norm_g": jnp.ones((C,), jnp.float32),
        "patch_norm_b": jnp.zeros((C,), jnp.float32),
        "final_norm_g": jnp.ones((C,), jnp.float32),
        "final_norm_b": jnp.zeros((C,), jnp.float32),
        "out_conv_w": dense(next(keys), 9 * C, out_c),
        "out_conv_b": jnp.zeros((out_c,), jnp.float32),
        "blocks": [],
    }
    for _ in range(depth):
        blk = {
            "norm1_g": jnp.ones((C,), jnp.float32),
            "norm1_b": jnp.zeros((C,), jnp.float32),
            "qkv_w": dense(next(keys), C, 3 * C),
            "qkv_b": jnp.zeros((3 * C,), jnp.float32),
            "proj_w": dense(next(keys), C, C),
            "proj_b": jnp.zeros((C,), jnp.float32),
            "rpb_table": 0.02
            * jax.random.normal(next(keys), ((2 * ws - 1) ** 2, heads), jnp.float32),
            "norm2_g": jnp.ones((C,), jnp.float32),
            "norm2_b": jnp.zeros((C,), jnp.float32),
            "fc1_w": dense(next(keys), C, mlp_hidden),
            "fc1_b": jnp.zeros((mlp_hidden,), jnp.float32),
            "fc2_w": dense(next(keys), mlp_hidden, C),
            "fc2_b": jnp.zeros((C,), jnp.float32),
        }
        p["blocks"].append(blk)
    return p


# -----------------------------------------------------------------------------
# Forward pass
# -----------------------------------------------------------------------------
def swin_block(x_tok, p, B, H, W, C, ws, shift, heads, rel_idx, shift_mask,
               final_gamma=None, final_beta=None):
    L = ws * ws
    nW = (H // ws) * (W // ws)
    hd = C // heads
    scale = hd ** -0.5

    # (1) LN1 + QKV projection, fused in one kernel.
    qkv = ln_matmul(x_tok, p["norm1_g"], p["norm1_b"], p["qkv_w"], p["qkv_b"])

    # Cyclic shift + window partition (layout glue, XLA).
    qkv_sp = qkv.reshape(B, H, W, 3 * C)
    if shift > 0:
        qkv_sp = jnp.roll(qkv_sp, (-shift, -shift), axis=(1, 2))
    qkv_win = window_partition(qkv_sp, ws).reshape(B, nW * L, 3 * C)

    # Relative-position bias (per-block table) + hoisted shift mask.
    rel_bias = p["rpb_table"][rel_idx.reshape(-1)].reshape(L, L, heads)
    rel_bias = rel_bias.transpose(2, 0, 1)                  # (heads, L, L)
    if shift > 0:
        bias = rel_bias[None, :, :, :] + shift_mask[:, None, :, :]  # (nW, heads, L, L)
    else:
        bias = rel_bias[None, :, :, :]                               # (1, heads, L, L)
    bias = bias.astype(jnp.float32)

    # (2) Window attention (all windows & heads per step) + output proj, fused.
    attn = window_attention_proj(
        qkv_win, bias, p["proj_w"], p["proj_b"],
        heads=heads, nW=nW, L=L, scale=scale)               # (B, nW*L, C)

    # Window reverse + roll back (layout glue).
    xs = window_reverse(attn.reshape(B * nW, L, C), ws, B, H, W)
    if shift > 0:
        xs = jnp.roll(xs, (shift, shift), axis=(1, 2))
    a = xs.reshape(B * H * W, C)

    # (3) residual + LN2 + MLP (GELU) + residual, fused (and, for the last block,
    # the network-level final LayerNorm is fused in as well).
    return res_ln_mlp(x_tok, a, p["norm2_g"], p["norm2_b"],
                      p["fc1_w"], p["fc1_b"], p["fc2_w"], p["fc2_b"],
                      final_gamma=final_gamma, final_beta=final_beta)


def toformerv2_forward(x_nchw, params, cfg):
    # Wrapper semantics: repeat single channel to 3.
    if x_nchw.shape[1] == 1:
        x_nchw = jnp.tile(x_nchw, (1, 3, 1, 1))
    B, Cin, H, W = x_nchw.shape
    C = cfg["EMB_DIM"]
    ws = cfg["WIN_SIZE"]
    heads = cfg["HEAD_NUM"][0]
    ps = cfg["PATCH_SIZE"]
    depth = len(params["blocks"])

    x = x_nchw.transpose(0, 2, 3, 1)                        # NHWC
    # PatchEmbed (patch_size x patch_size conv as matmul) + optional LayerNorm (fused).
    Hp, Wp = H // ps, W // ps
    patches = x.reshape(B, Hp, ps, Wp, ps, Cin).transpose(0, 1, 3, 2, 4, 5)
    patches = patches.reshape(B * Hp * Wp, ps * ps * Cin)
    if cfg["PATCH_NORM"]:
        tok = matmul_bias_ln(patches, params["patch_w"], params["patch_b"],
                             params["patch_norm_g"], params["patch_norm_b"])
    else:
        tok = matmul_bias(patches, params["patch_w"], params["patch_b"])
    # TODO(synk): APE / dropout / drop-path are disabled in this config (0 / False).

    rel_idx = relative_position_index(ws)
    # Hoist the shifted-window mask out of the block loop (parameter independent).
    shift_mask = None
    if depth > 1 and ws // 2 > 0:
        shift_mask = shifted_window_mask(Hp, Wp, ws, ws // 2)

    for i, blk in enumerate(params["blocks"]):
        shift = 0 if i % 2 == 0 else ws // 2
        is_last = i == depth - 1
        tok = swin_block(
            tok, blk, B, Hp, Wp, C, ws, shift, heads, rel_idx, shift_mask,
            final_gamma=params["final_norm_g"] if is_last else None,
            final_beta=params["final_norm_b"] if is_last else None,
        )

    if depth == 0:
        tok = layernorm(tok, params["final_norm_g"], params["final_norm_b"])

    feat = tok.reshape(B, Hp, Wp, C)
    # Output 3x3 conv (im2col + Pallas matmul) -> out_chans.
    cols = im2col3x3(feat)
    out = matmul_bias(cols, params["out_conv_w"], params["out_conv_b"])
    out = out.reshape(B, Hp, Wp, cfg["out_chans"]).transpose(0, 3, 1, 2)  # NCHW
    return out


# -----------------------------------------------------------------------------
if __name__ == "__main__":
    cfg = {
        "IMG_SIZE": 16,
        "PATCH_SIZE": 1,
        "in_chans": 3,
        "out_chans": 3,
        "EMB_DIM": 32,
        "DEPTH_EN": [2],
        "HEAD_NUM": [4],
        "WIN_SIZE": 4,
        "MLP_RATIO": 4.0,
        "QKV_BIAS": True,
        "QK_SCALE": None,
        "DROP_RATE": 0.0,
        "DROP_PATH_RATE": 0.0,
        "APE": False,
        "PATCH_NORM": True,
        "USE_CHECKPOINTS": False,
    }

    key = jax.random.PRNGKey(0)
    kx, kp = jax.random.split(key)
    # Single-channel input to exercise the channel-repeat branch of the wrapper.
    x = jax.random.normal(kx, (2, 1, 16, 16), jnp.float32)
    params = init_params(kp, cfg)

    logits = toformerv2_forward(x, params, cfg)
    jax.block_until_ready(logits)
    assert logits.shape == (2, cfg["out_chans"], 16, 16)
    print("KERNEL_OK")
</pallas_src>

<mosaic_0001>
module attributes {stable_mosaic.version = 11 : i64} {
  func.func @_matmul_bias_ln_kernel(%arg0: i32, %arg1: memref<256x3xf32, #tpu.memory_space<vmem>>, %arg2: memref<3x32xf32, #tpu.memory_space<vmem>>, %arg3: memref<1x32xf32, #tpu.memory_space<vmem>>, %arg4: memref<1x32xf32, #tpu.memory_space<vmem>>, %arg5: memref<1x32xf32, #tpu.memory_space<vmem>>, %arg6: memref<256x32xf32, #tpu.memory_space<vmem>>) attributes {dimension_semantics = [#tpu.dimension_semantics<parallel>], iteration_bounds = array<i64: 2>, scalar_prefetch = 0 : i64, scratch_operands = 0 : i64, tpu.core_type = #tpu.core_type<tc>, window_params = [{transform_indices = @transform_0, window_bounds = array<i64: 256, 3>}, {pipeline_mode = #tpu.pipeline_mode<synchronous>, transform_indices = @transform_1, window_bounds = array<i64: 3, 32>}, {pipeline_mode = #tpu.pipeline_mode<synchronous>, transform_indices = @transform_2, window_bounds = array<i64: 1, 32>}, {pipeline_mode = #tpu.pipeline_mode<synchronous>, transform_indices = @transform_3, window_bounds = array<i64: 1, 32>}, {pipeline_mode = #tpu.pipeline_mode<synchronous>, transform_indices = @transform_4, window_bounds = array<i64: 1, 32>}, {transform_indices = @transform_5, window_bounds = array<i64: 256, 32>}]} {
    %c0 = arith.constant 0 : index
    %c0_0 = arith.constant 0 : index
    %0 = vector.load %arg1[%c0, %c0_0] : memref<256x3xf32, #tpu.memory_space<vmem>>, vector<256x3xf32>
    %1 = arith.truncf %0 : vector<256x3xf32> to vector<256x3xbf16>
    %c0_1 = arith.constant 0 : index
    %c0_2 = arith.constant 0 : index
    %2 = vector.load %arg2[%c0_1, %c0_2] : memref<3x32xf32, #tpu.memory_space<vmem>>, vector<3x32xf32>
    %3 = arith.truncf %2 : vector<3x32xf32> to vector<3x32xbf16>
    %cst = arith.constant dense<0.000000e+00> : vector<256x32xf32>
    %4 = tpu.matmul %1, %3, %cst {dimension_numbers = #tpu.dot_dimension_numbers<[1], [0], [0], [1], [0, 0, 1, 1], [], []>} : vector<256x3xbf16>, vector<3x32xbf16>, vector<256x32xf32> -> vector<256x32xf32>
    %c0_3 = arith.constant 0 : index
    %c0_4 = arith.constant 0 : index
    %5 = vector.load %arg3[%c0_3, %c0_4] : memref<1x32xf32, #tpu.memory_space<vmem>>, vector<1x32xf32>
    %6 = vector.broadcast %5 : vector<1x32xf32> to vector<256x32xf32>
    %7 = arith.addf %4, %6 : vector<256x32xf32>
    %cst_5 = arith.constant dense<0.000000e+00> : vector<256xf32>
    %8 = vector.multi_reduction <add>, %7, %cst_5 [1] : vector<256x32xf32> to vector<256xf32>
    %9 = vector.shape_cast %8 : vector<256xf32> to vector<256x1xf32>
    %cst_6 = arith.constant 3.200000e+01 : f32
    %10 = vector.broadcast %cst_6 : f32 to vector<256x1xf32>
    %11 = arith.divf %9, %10 : vector<256x1xf32>
    %12 = vector.broadcast %11 : vector<256x1xf32> to vector<256x32xf32>
    %13 = arith.subf %7, %12 : vector<256x32xf32>
    %14 = arith.mulf %13, %13 : vector<256x32xf32>
    %cst_7 = arith.constant dense<0.000000e+00> : vector<256xf32>
    %15 = vector.multi_reduction <add>, %14, %cst_7 [1] : vector<256x32xf32> to vector<256xf32>
    %16 = vector.shape_cast %15 : vector<256xf32> to vector<256x1xf32>
    %cst_8 = arith.constant 3.200000e+01 : f32
    %17 = vector.broadcast %cst_8 : f32 to vector<256x1xf32>
    %18 = arith.divf %16, %17 : vector<256x1xf32>
    %19 = vector.broadcast %11 : vector<256x1xf32> to vector<256x32xf32>
    %20 = arith.subf %7, %19 : vector<256x32xf32>
    %cst_9 = arith.constant 9.99999974E-6 : f32
    %21 = vector.broadcast %cst_9 : f32 to vector<256x1xf32>
    %22 = arith.addf %18, %21 : vector<256x1xf32>
    %23 = math.rsqrt %22 : vector<256x1xf32>
    %24 = vector.broadcast %23 : vector<256x1xf32> to vector<256x32xf32>
    %25 = arith.mulf %20, %24 : vector<256x32xf32>
    %c0_10 = arith.constant 0 : index
    %c0_11 = arith.constant 0 : index
    %26 = vector.load %arg4[%c0_10, %c0_11] : memref<1x32xf32, #tpu.memory_space<vmem>>, vector<1x32xf32>
    %27 = vector.broadcast %26 : vector<1x32xf32> to vector<256x32xf32>
    %28 = arith.mulf %25, %27 : vector<256x32xf32>
    %c0_12 = arith.constant 0 : index
    %c0_13 = arith.constant 0 : index
    %29 = vector.load %arg5[%c0_12, %c0_13] : memref<1x32xf32, #tpu.memory_space<vmem>>, vector<1x32xf32>
    %30 = vector.broadcast %29 : vector<1x32xf32> to vector<256x32xf32>
    %31 = arith.addf %28, %30 : vector<256x32xf32>
    %c0_14 = arith.constant 0 : index
    %c0_15 = arith.constant 0 : index
    %32 = vector.load %arg6[%c0_14, %c0_15] : memref<256x32xf32, #tpu.memory_space<vmem>>, vector<256x32xf32>
    tpu.vector_store %arg6[%c0_14, %c0_15], %31 {strides = array<i32>} : memref<256x32xf32, #tpu.memory_space<vmem>>, vector<256x32xf32>,
    return
  }
  func.func @transform_0(%arg0: i32) -> (i32, i32) {
    %c0_i32 = arith.constant 0 : i32
    %c0_i32_0 = arith.constant 0 : i32
    return %arg0, %c0_i32 : i32, i32
  }
  func.func @transform_1(%arg0: i32) -> (i32, i32) {
    %c0_i32 = arith.constant 0 : i32
    %c0_i32_0 = arith.constant 0 : i32
    %c0_i32_1 = arith.constant 0 : i32
    return %c0_i32, %c0_i32_0 : i32, i32
  }
  func.func @transform_2(%arg0: i32) -> (i32, i32) {
    %c0_i32 = arith.constant 0 : i32
    %c0_i32_0 = arith.constant 0 : i32
    %c0_i32_1 = arith.constant 0 : i32
    return %c0_i32, %c0_i32_0 : i32, i32
  }
  func.func @transform_3(%arg0: i32) -> (i32, i32) {
    %c0_i32 = arith.constant 0 : i32
    %c0_i32_0 = arith.constant 0 : i32
    %c0_i32_1 = arith.constant 0 : i32
    return %c0_i32, %c0_i32_0 : i32, i32
  }
  func.func @transform_4(%arg0: i32) -> (i32, i32) {
    %c0_i32 = arith.constant 0 : i32
    %c0_i32_0 = arith.constant 0 : i32
    %c0_i32_1 = arith.constant 0 : i32
    return %c0_i32, %c0_i32_0 : i32, i32
  }
  func.func @transform_5(%arg0: i32) -> (i32, i32) {
    %c0_i32 = arith.constant 0 : i32
    %c0_i32_0 = arith.constant 0 : i32
    return %arg0, %c0_i32 : i32, i32
  }
}

</mosaic_0001>

<llo_original>
// kernel: tpu_custom_call.1
$region0: #{tpu_custom_call.1}
  #allocation0 [shape = 'u32[]', space=smem, size = 0x4, offset = 0x4, fixed_abs, tag = 'smem constant byte address 0x4 - core index']
  #allocation1 [shape = 'u32[144,128]{1,0:T(1,128)}', space=vmem, size = 0x12000, scoped, tag = 'internal scratch']
  %s0 = inlined_call_operand.vmem [shape: f32[512,3], index: 0, kind: input, shape index: {}]
  %s1 = inlined_call_operand.vmem [shape: f32[3,32], index: 1, kind: input, shape index: {}]
  %s2 = inlined_call_operand.vmem [shape: f32[1,32], index: 2, kind: input, shape index: {}]
  %s3 = inlined_call_operand.vmem [shape: f32[1,32], index: 3, kind: input, shape index: {}]
  %s4 = inlined_call_operand.vmem [shape: f32[1,32], index: 4, kind: input, shape index: {}]
  %s5 = inlined_call_operand.vmem [shape: f32[512,32], index: 5, kind: output, shape index: {}]
  %s6 = sld [smem:[#allocation0]]
  $region53: #{tpu_custom_call.1} parent=0
    _
  %s8 = ssub.s32 1, %s6
  %s9 = scalar_select 0, %s8, %s6
  loop: start=0, step=1, limit=4
  $region2: #{tpu_custom_call.1} parent=0 // loop_pre_header
    _
  $region3: #{tpu_custom_call.1} parent=0 // loop_header
    %s11 = sphi 0, %s15
    %p12 = scmp.ge.s32.totalorder %s11, 4
    %s21 = sphi 0, %s23
    %s24 = sphi 0, %s21
    %s25 = sphi 0, %s24
    %s41 = sphi 0, %s25
    %s45 = sphi 0, %s45
    %s47 = sphi 0, %s45
    %s48 = sphi 0, %s47
    %s62 = sphi 0, %s48
    %s66 = sphi 0, %s66
    %s68 = sphi 0, %s66
    %s69 = sphi 0, %s68
    %s83 = sphi 0, %s69
    %s87 = sphi 0, %s87
    %s89 = sphi 0, %s87
    %s90 = sphi 0, %s89
    %s104 = sphi 0, %s90
    %s108 = sphi 0, %s108
    %s110 = sphi 0, %s108
    %s111 = sphi 0, %s110
    %s125 = sphi 0, %s111
    %s131 = sphi 0, %s133
    %s134 = sphi 0, %s131
    %s135 = sphi 0, %s134
    %s151 = sphi 0, %s135
  $region4: #{tpu_custom_call.1} parent=0 // loop_header_branch
    %14 = sbr.rel (%p12) target = $region8
  $region5: #{tpu_custom_call.1} parent=0 // loop_body
    %s16 = ssub.s32 %s11, 1
    %s17 = ssub.s32 %s11, 2
    %s18 = sadd.s32 %s11, 1
    %s19 = ssub.s32 %s11, %s18
    %p20 = scmp.eq.s32.totalorder %s19, 0
    %s22 = sadd.s32 %s21, 1
    %s23 = scalar_select %p20, %s21, %s22
    %p26 = pneg %p20
    %p27 = scmp.eq.s32.totalorder %s11, 1
    %p28 = por %p26, %p27
    %p29 = scmp.ne.s32.totalorder %s21, %s24
    %p30 = scmp.eq.s32.totalorder %s11, 0
    %p31 = por %p29, %p30
    %p32 = scmp.ne.s32.totalorder %s21, %s24
    %p33 = scmp.eq.s32.totalorder %s16, 1
    %p34 = por %p32, %p33
    %p35 = scmp.ne.s32.totalorder %s24, %s25
    %p36 = scmp.eq.s32.totalorder %s16, 0
    %p37 = por %p35, %p36
    %p38 = scmp.ne.s32.totalorder %s24, %s25
    %p39 = scmp.eq.s32.totalorder %s17, 1
    %p40 = por %p38, %p39
    %p42 = scmp.ne.s32.totalorder %s25, %s41
    %p43 = scmp.eq.s32.totalorder %s17, 0
    %p44 = por %p42, %p43
    %s46 = sadd.s32 %s45, 1
    %p49 = scmp.eq.s32.totalorder %s11, 1
    %p50 = scmp.ne.s32.totalorder %s45, %s47
    %p51 = scmp.eq.s32.totalorder %s11, 0
    %p52 = por %p50, %p51
    %p53 = scmp.ne.s32.totalorder %s45, %s47
    %p54 = scmp.eq.s32.totalorder %s16, 1
    %p55 = por %p53, %p54
    %p56 = scmp.ne.s32.totalorder %s47, %s48
    %p57 = scmp.eq.s32.totalorder %s16, 0
    %p58 = por %p56, %p57
    %p59 = scmp.ne.s32.totalorder %s47, %s48
    %p60 = scmp.eq.s32.totalorder %s17, 1
    %p61 = por %p59, %p60
    %p63 = scmp.ne.s32.totalorder %s48, %s62
    %p64 = scmp.eq.s32.totalorder %s17, 0
    %p65 = por %p63, %p64
    %s67 = sadd.s32 %s66, 1
    %p70 = scmp.eq.s32.totalorder %s11, 1
    %p71 = scmp.ne.s32.totalorder %s66, %s68
    %p72 = scmp.eq.s32.totalorder %s11, 0
    %p73 = por %p71, %p72
    %p74 = scmp.ne.s32.totalorder %s66, %s68
    %p75 = scmp.eq.s32.totalorder %s16, 1
    %p76 = por %p74, %p75
    %p77 = scmp.ne.s32.totalorder %s68, %s69
    %p78 = scmp.eq.s32.totalorder %s16, 0
    %p79 = por %p77, %p78
    %p80 = scmp.ne.s32.totalorder %s68, %s69
    %p81 = scmp.eq.s32.totalorder %s17, 1
    %p82 = por %p80, %p81
    %p84 = scmp.ne.s32.totalorder %s69, %s83
    %p85 = scmp.eq.s32.totalorder %s17, 0
    %p86 = por %p84, %p85
    %s88 = sadd.s32 %s87, 1
    %p91 = scmp.eq.s32.totalorder %s11, 1
    %p92 = scmp.ne.s32.totalorder %s87, %s89
    %p93 = scmp.eq.s32.totalorder %s11, 0
    %p94 = por %p92, %p93
    %p95 = scmp.ne.s32.totalorder %s87, %s89
    %p96 = scmp.eq.s32.totalorder %s16, 1
    %p97 = por %p95, %p96
    %p98 = scmp.ne.s32.totalorder %s89, %s90
    %p99 = scmp.eq.s32.totalorder %s16, 0
    %p100 = por %p98, %p99
    %p101 = scmp.ne.s32.totalorder %s89, %s90
    %p102 = scmp.eq.s32.totalorder %s17, 1
    %p103 = por %p101, %p102
    %p105 = scmp.ne.s32.totalorder %s90, %s104
    %p106 = scmp.eq.s32.totalorder %s17, 0
    %p107 = por %p105, %p106
    %s109 = sadd.s32 %s108, 1
    %p112 = scmp.eq.s32.totalorder %s11, 1
    %p113 = scmp.ne.s32.totalorder %s108, %s110
    %p114 = scmp.eq.s32.totalorder %s11, 0
    %p115 = por %p113, %p114
    %p116 = scmp.ne.s32.totalorder %s108, %s110
    %p117 = scmp.eq.s32.totalorder %s16, 1
    %p118 = por %p116, %p117
    %p119 = scmp.ne.s32.totalorder %s110, %s111
    %p120 = scmp.eq.s32.totalorder %s16, 0
    %p121 = por %p119, %p120
    %p122 = scmp.ne.s32.totalorder %s110, %s111
    %p123 = scmp.eq.s32.totalorder %s17, 1
    %p124 = por %p122, %p123
    %p126 = scmp.ne.s32.totalorder %s111, %s125
    %p127 = scmp.eq.s32.totalorder %s17, 0
    %p128 = por %p126, %p127
    %s129 = ssub.s32 %s11, %s18
    %p130 = scmp.eq.s32.totalorder %s129, 0
    %s132 = sadd.s32 %s131, 1
    %s133 = scalar_select %p130, %s131, %s132
    %p136 = pneg %p130
    %p137 = scmp.eq.s32.totalorder %s11, 1
    %p138 = por %p136, %p137
    %p139 = scmp.ne.s32.totalorder %s131, %s134
    %p140 = scmp.eq.s32.totalorder %s11, 0
    %p141 = por %p139, %p140
    %p142 = scmp.ne.s32.totalorder %s131, %s134
    %p143 = scmp.eq.s32.totalorder %s16, 1
    %p144 = por %p142, %p143
    %p145 = scmp.ne.s32.totalorder %s134, %s135
    %p146 = scmp.eq.s32.totalorder %s16, 0
    %p147 = por %p145, %p146
    %p148 = scmp.ne.s32.totalorder %s134, %s135
    %p149 = scmp.eq.s32.totalorder %s17, 1
    %p150 = por %p148, %p149
    %p152 = scmp.ne.s32.totalorder %s135, %s151
    %p153 = scmp.eq.s32.totalorder %s17, 0
    %p154 = por %p152, %p153
    %p155 = scmp.le.s32.totalorder 1, %s11
    %p156 = scmp.lt.s32.totalorder %s11, 3
    %p157 = pnand %p155, %p156
    %p158 = pneg %p157
    // Predicated region
    $region9: #{tpu_custom_call.1} parent=5 // pred_check
      _
    $region10: #{tpu_custom_call.1} parent=5 // pred_check_branch
      %160 = sbr.rel (%p157) target = $region12
    $region11: #{tpu_custom_call.1} parent=5 // pred_region
      %s161 = ssub.s32 %s11, 1
      // Predicated region
      $region13: #{tpu_custom_call.1} parent=11 // pred_check
        %p162 = pneg %p58
      $region14: #{tpu_custom_call.1} parent=11 // pred_check_branch
        %164 = sbr.rel (%p162) target = $region16
      $region15: #{tpu_custom_call.1} parent=11 // pred_region
        _
      $region16: #{tpu_custom_call.1} parent=11 // pred_fallthru
        _
      // Predicated region
      $region17: #{tpu_custom_call.1} parent=11 // pred_check
        %p165 = pneg %p79
      $region18: #{tpu_custom_call.1} parent=11 // pred_check_branch
        %167 = sbr.rel (%p165) target = $region20
      $region19: #{tpu_custom_call.1} parent=11 // pred_region
        _
      $region20: #{tpu_custom_call.1} parent=11 // pred_fallthru
        _
      // Predicated region
      $region21: #{tpu_custom_call.1} parent=11 // pred_check
        %p168 = pneg %p100
      $region22: #{tpu_custom_call.1} parent=11 // pred_check_branch
        %170 = sbr.rel (%p168) target = $region24
      $region23: #{tpu_custom_call.1} parent=11 // pred_region
        _
      $region24: #{tpu_custom_call.1} parent=11 // pred_fallthru
        _
      // Predicated region
      $region25: #{tpu_custom_call.1} parent=11 // pred_check
        %p171 = pneg %p121
      $region26: #{tpu_custom_call.1} parent=11 // pred_check_branch
        %173 = sbr.rel (%p171) target = $region28
      $region27: #{tpu_custom_call.1} parent=11 // pred_region
        _
      $region28: #{tpu_custom_call.1} parent=11 // pred_fallthru
        _
    $region12: #{tpu_custom_call.1} parent=5 // pred_fallthru
      _
    %p174 = scmp.lt.s32.totalorder %s11, 2
    // Predicated region
    $region29: #{tpu_custom_call.1} parent=5 // pred_check
      %p175 = pneg %p174
    $region30: #{tpu_custom_call.1} parent=5 // pred_check_branch
      %177 = sbr.rel (%p175) target = $region32
    $region31: #{tpu_custom_call.1} parent=5 // pred_region
      // Predicated region
      $region33: #{tpu_custom_call.1} parent=31 // pred_check
        %p178 = pneg %p31
      $region34: #{tpu_custom_call.1} parent=31 // pred_check_branch
        %180 = sbr.rel (%p178) target = $region36
      $region35: #{tpu_custom_call.1} parent=31 // pred_region
        %s181 = smul.u32 32, %s11
        %p182 = scmp.lt.s32.totalorder %s181, 63
        %s183 = scalar_select %p182, %s181, 63
        %s184 = smul.addr %s183, 8
        %s185 = scalar_lea.vmem %s0, %s184
        %s186 = smul.u32 32, %s11
      $region36: #{tpu_custom_call.1} parent=31 // pred_fallthru
        _
    $region32: #{tpu_custom_call.1} parent=5 // pred_fallthru
      _
    %p187 = scmp.le.s32.totalorder 1, %s11
    %p188 = scmp.lt.s32.totalorder %s11, 3
    %p189 = pnand %p187, %p188
    %p190 = pneg %p189
    // Predicated region
    $region37: #{tpu_custom_call.1} parent=5 // pred_check
      _
    $region38: #{tpu_custom_call.1} parent=5 // pred_check_branch
      %192 = sbr.rel (%p189) target = $region40
    $region39: #{tpu_custom_call.1} parent=5 // pred_region
      %s193 = ssub.s32 %s11, 1
      %s194 = smul.u32 32, %s16
      %p195 = scmp.lt.s32.totalorder %s194, 63
      %s196 = scalar_select %p195, %s194, 63
      %s197 = smul.addr %s196, 8
      %s198 = scalar_lea.vmem %s0, %s197
      %p199 = pneg %p37
      %p200 = pneg %p34
      %p201 = pneg %p58
      %p202 = pneg %p55
      %p203 = pneg %p79
      %p204 = pneg %p76
      %p205 = pneg %p100
      %p206 = pneg %p97
      %p207 = pneg %p121
      %p208 = pneg %p118
      %p209 = pneg %p147
      %p210 = pneg %p144
      %s211 = smul.u32 32, %s16
      %p212 = scmp.lt.s32.totalorder %s211, 63
      %s213 = scalar_select %p212, %s211, 63
      %s214 = smul.addr %s213, 8
      %s215 = scalar_lea.vmem %s5, %s214
      %s216 = smul.u32 32, %s16
      %p217 = scmp.lt.s32.totalorder %s216, 63
      %s218 = scalar_select %p217, %s216, 63
      %s219 = smul.addr %s218, 8
      %s220 = scalar_lea.vmem %s0, %s219
      %s221 = smul.u32 32, %s16
      %s222 = smul.u32 32, %s16
      %p223 = scmp.lt.s32.totalorder %s222, 63
      %s224 = scalar_select %p223, %s222, 63
      %s225 = smul.addr %s224, 8
      %s226 = scalar_lea.vmem %s5, %s225
      %s227 = smul.u32 32, %s16
      %v229 = vld [vmem:[%s220] sm:$0xff]
      %v230 = vld [vmem:[%s220 + $0x8] sm:$0xff]
      %v231 = vld [vmem:[%s220 + $0x10] sm:$0xff]
      %v232 = vld [vmem:[%s220 + $0x18] sm:$0xff]
      %v233 = vld [vmem:[%s220 + $0x20] sm:$0xff]
      %v234 = vld [vmem:[%s220 + $0x28] sm:$0xff]
      %v235 = vld [vmem:[%s220 + $0x30] sm:$0xff]
      %v236 = vld [vmem:[%s220 + $0x38] sm:$0xff]
      %v237 = vld [vmem:[%s220 + $0x40] sm:$0xff]
      %v238 = vld [vmem:[%s220 + $0x48] sm:$0xff]
      %v239 = vld [vmem:[%s220 + $0x50] sm:$0xff]
      %v240 = vld [vmem:[%s220 + $0x58] sm:$0xff]
      %v241 = vld [vmem:[%s220 + $0x60] sm:$0xff]
      %v242 = vld [vmem:[%s220 + $0x68] sm:$0xff]
      %v243 = vld [vmem:[%s220 + $0x70] sm:$0xff]
      %v244 = vld [vmem:[%s220 + $0x78] sm:$0xff]
      %v245 = vld [vmem:[%s220 + $0x80] sm:$0xff]
      %v246 = vld [vmem:[%s220 + $0x88] sm:$0xff]
      %v247 = vld [vmem:[%s220 + $0x90] sm:$0xff]
      %v248 = vld [vmem:[%s220 + $0x98] sm:$0xff]
      %v249 = vld [vmem:[%s220 + $0xa0] sm:$0xff]
      %v250 = vld [vmem:[%s220 + $0xa8] sm:$0xff]
      %v251 = vld [vmem:[%s220 + $0xb0] sm:$0xff]
      %v252 = vld [vmem:[%s220 + $0xb8] sm:$0xff]
      %v253 = vld [vmem:[%s220 + $0xc0] sm:$0xff]
      %v254 = vld [vmem:[%s220 + $0xc8] sm:$0xff]
      %v255 = vld [vmem:[%s220 + $0xd0] sm:$0xff]
      %v256 = vld [vmem:[%s220 + $0xd8] sm:$0xff]
      %v257 = vld [vmem:[%s220 + $0xe0] sm:$0xff]
      %v258 = vld [vmem:[%s220 + $0xe8] sm:$0xff]
      %v259 = vld [vmem:[%s220 + $0xf0] sm:$0xff]
      %v260 = vld [vmem:[%s220 + $0xf8] sm:$0xff]
      %v261 = vpack.c.bf16 %v230, %v229
      %v262 = vpack.c.bf16 %v232, %v231
      %v263 = vpack.c.bf16 %v234, %v233
      %v264 = vpack.c.bf16 %v236, %v235
      %v265 = vpack.c.bf16 %v238, %v237
      %v266 = vpack.c.bf16 %v240, %v239
      %v267 = vpack.c.bf16 %v242, %v241
      %v268 = vpack.c.bf16 %v244, %v243
      %v269 = vpack.c.bf16 %v246, %v245
      %v270 = vpack.c.bf16 %v248, %v247
      %v271 = vpack.c.bf16 %v250, %v249
      %v272 = vpack.c.bf16 %v252, %v251
      %v273 = vpack.c.bf16 %v254, %v253
      %v274 = vpack.c.bf16 %v256, %v255
      %v275 = vpack.c.bf16 %v258, %v257
      %v276 = vpack.c.bf16 %v260, %v259
      %v277 = vld [vmem:[%s1] sm:$0x7]
      %v278 = vpack.c.bf16 %v277, %v277
      %v279 = vld [vmem:[%s2] sm:$0x1]
      %v281 = vlaneseq
      %v282 = vshrl.u32 %v281, 7
      %v283 = vsub.s32 0, %v282
      %v284 = vrot.slane %v279, %v283
      %vm286 = vcmask 23552
      %v288 = vsel %vm286, %v261, 0
      %v291 = vsel %vm286, %v262, 0
      %v294 = vsel %vm286, %v263, 0
      %v297 = vsel %vm286, %v264, 0
      %v300 = vsel %vm286, %v265, 0
      %v303 = vsel %vm286, %v266, 0
      %v306 = vsel %vm286, %v267, 0
      %v309 = vsel %vm286, %v268, 0
      %v312 = vsel %vm286, %v269, 0
      %v315 = vsel %vm286, %v270, 0
      %v318 = vsel %vm286, %v271, 0
      %v321 = vsel %vm286, %v272, 0
      %v324 = vsel %vm286, %v273, 0
      %v327 = vsel %vm286, %v274, 0
      %v330 = vsel %vm286, %v275, 0
      %v333 = vsel %vm286, %v276, 0
      %vm335 = vcmask 1040384
      %vm336 = vcmask 1041408
      %v337 = vsel %vm335, 4294967295, 65535
      %v338 = vsel %vm336, %v337, 0
      %v340 = vand.u32 %v278, %v338
      %342 = vmatprep.subr.bf16.mxu0 0
      %343 = vmatpush1.bf16.msra.mxu0 %v340
      %344 = vmatprep.subr.bf16.mxu0 0
      %345 = vmatpush1.bf16.msra.mxu0 0
      %346 = vmatprep.subr.bf16.mxu0 0
      %347 = vmatpush1.bf16.msra.mxu0 0
      %348 = vmatprep.subr.bf16.mxu0 0
      %349 = vmatpush1.bf16.msra.mxu0 0
      %350 = vmatprep.subr.bf16.mxu0 0
      %351 = vmatpush1.bf16.msra.mxu0 0
      %352 = vmatprep.subr.bf16.mxu0 0
      %353 = vmatpush1.bf16.msra.mxu0 0
      %354 = vmatprep.subr.bf16.mxu0 0
      %355 = vmatpush1.bf16.msra.mxu0 0
      %356 = vmatprep.subr.bf16.mxu0 0
      %357 = vmatpush1.bf16.msra.mxu0 0
      %358 = vmatprep.subr.bf16.mxu0 0
      %359 = vmatpush1.bf16.msra.mxu0 0
      %360 = vmatprep.subr.bf16.mxu0 0
      %361 = vmatpush1.bf16.msra.mxu0 0
      %362 = vmatprep.subr.bf16.mxu0 0
      %363 = vmatpush1.bf16.msra.mxu0 0
      %364 = vmatprep.subr.bf16.mxu0 0
      %365 = vmatpush1.bf16.msra.mxu0 0
      %366 = vmatprep.subr.bf16.mxu0 0
      %367 = vmatpush1.bf16.msra.mxu0 0
      %368 = vmatprep.subr.bf16.mxu0 0
      %369 = vmatpush1.bf16.msra.mxu0 0
      %370 = vmatprep.subr.bf16.mxu0 0
      %371 = vmatpush1.bf16.msra.mxu0 0
      %372 = vmatprep.subr.bf16.mxu0 0
      %373 = vmatpush1.bf16.msra.mxu0 0
      %374 = vmatprep.mubr.bf16.mxu0 0
      %375 = vmatmul.mubr.bf16.gmra.mrb[0].mxu0 %v288
      %v376 = vpop.f32.mrb[0].mxu0
      %v377 = vadd.f32 %v284, %v376
      %v378 = vpop.f32.mrb[0].mxu0
      %v379 = vpop.f32.mrb[0].mxu0
      %v380 = vadd.f32 %v284, %v379
      %v381 = vpop.f32.mrb[0].mxu0
      %382 = vmatprep.mubr.bf16.mxu0 0
      %383 = vmatmul.mubr.bf16.gmra.mrb[0].mxu0 %v291
      %v384 = vpop.f32.mrb[0].mxu0
      %v385 = vadd.f32 %v284, %v384
      %v386 = vpop.f32.mrb[0].mxu0
      %v387 = vpop.f32.mrb[0].mxu0
      %v388 = vadd.f32 %v284, %v387
      %v389 = vpop.f32.mrb[0].mxu0
      %390 = vmatprep.mubr.bf16.mxu0 0
      %391 = vmatmul.mubr.bf16.gmra.mrb[0].mxu0 %v294
      %v392 = vpop.f32.mrb[0].mxu0
      %v393 = vadd.f32 %v284, %v392
      %v394 = vpop.f32.mrb[0].mxu0
      %v395 = vpop.f32.mrb[0].mxu0
      %v396 = vadd.f32 %v284, %v395
      %v397 = vpop.f32.mrb[0].mxu0
      %398 = vmatprep.mubr.bf16.mxu0 0
      %399 = vmatmul.mubr.bf16.gmra.mrb[0].mxu0 %v297
      %v400 = vpop.f32.mrb[0].mxu0
      %v401 = vadd.f32 %v284, %v400
      %v402 = vpop.f32.mrb[0].mxu0
      %v403 = vpop.f32.mrb[0].mxu0
      %v404 = vadd.f32 %v284, %v403
      %v405 = vpop.f32.mrb[0].mxu0
      %406 = vmatprep.mubr.bf16.mxu0 0
      %407 = vmatmul.mubr.bf16.gmra.mrb[0].mxu0 %v300
      %v408 = vpop.f32.mrb[0].mxu0
      %v409 = vadd.f32 %v284, %v408
      %v410 = vpop.f32.mrb[0].mxu0
      %v411 = vpop.f32.mrb[0].mxu0
      %v412 = vadd.f32 %v284, %v411
      %v413 = vpop.f32.mrb[0].mxu0
      %414 = vmatprep.mubr.bf16.mxu0 0
      %415 = vmatmul.mubr.bf16.gmra.mrb[0].mxu0 %v303
      %v416 = vpop.f32.mrb[0].mxu0
      %v417 = vadd.f32 %v284, %v416
      %v418 = vpop.f32.mrb[0].mxu0
      %v419 = vpop.f32.mrb[0].mxu0
      %v420 = vadd.f32 %v284, %v419
      %v421 = vpop.f32.mrb[0].mxu0
      %422 = vmatprep.mubr.bf16.mxu0 0
      %423 = vmatmul.mubr.bf16.gmra.mrb[0].mxu0 %v306
      %v424 = vpop.f32.mrb[0].mxu0
      %v425 = vadd.f32 %v284, %v424
      %v426 = vpop.f32.mrb[0].mxu0
      %v427 = vpop.f32.mrb[0].mxu0
      %v428 = vadd.f32 %v284, %v427
      %v429 = vpop.f32.mrb[0].mxu0
      %430 = vmatprep.mubr.bf16.mxu0 0
      %431 = vmatmul.mubr.bf16.gmra.mrb[0].mxu0 %v309
      %v432 = vpop.f32.mrb[0].mxu0
      %v433 = vadd.f32 %v284, %v432
      %v434 = vpop.f32.mrb[0].mxu0
      %v435 = vpop.f32.mrb[0].mxu0
      %v436 = vadd.f32 %v284, %v435
      %v437 = vpop.f32.mrb[0].mxu0
      %438 = vmatprep.mubr.bf16.mxu0 0
      %439 = vmatmul.mubr.bf16.gmra.mrb[0].mxu0 %v312
      %v440 = vpop.f32.mrb[0].mxu0
      %v441 = vadd.f32 %v284, %v440
      %v442 = vpop.f32.mrb[0].mxu0
      %v443 = vpop.f32.mrb[0].mxu0
      %v444 = vadd.f32 %v284, %v443
      %v445 = vpop.f32.mrb[0].mxu0
      %446 = vmatprep.mubr.bf16.mxu0 0
      %447 = vmatmul.mubr.bf16.gmra.mrb[0].mxu0 %v315
      %v448 = vpop.f32.mrb[0].mxu0
      %v449 = vadd.f32 %v284, %v448
      %v450 = vpop.f32.mrb[0].mxu0
      %v451 = vpop.f32.mrb[0].mxu0
      %v452 = vadd.f32 %v284, %v451
      %v453 = vpop.f32.mrb[0].mxu0
      %454 = vmatprep.mubr.bf16.mxu0 0
      %455 = vmatmul.mubr.bf16.gmra.mrb[0].mxu0 %v318
      %v456 = vpop.f32.mrb[0].mxu0
      %v457 = vadd.f32 %v284, %v456
      %v458 = vpop.f32.mrb[0].mxu0
      %v459 = vpop.f32.mrb[0].mxu0
      %v460 = vadd.f32 %v284, %v459
      %v461 = vpop.f32.mrb[0].mxu0
      %462 = vmatprep.mubr.bf16.mxu0 0
      %463 = vmatmul.mubr.bf16.gmra.mrb[0].mxu0 %v321
      %v464 = vpop.f32.mrb[0].mxu0
      %v465 = vadd.f32 %v284, %v464
      %v466 = vpop.f32.mrb[0].mxu0
      %v467 = vpop.f32.mrb[0].mxu0
      %v468 = vadd.f32 %v284, %v467
      %v469 = vpop.f32.mrb[0].mxu0
      %470 = vmatprep.mubr.bf16.mxu0 0
      %471 = vmatmul.mubr.bf16.gmra.mrb[0].mxu0 %v324
      %v472 = vpop.f32.mrb[0].mxu0
      %v473 = vadd.f32 %v284, %v472
      %v474 = vpop.f32.mrb[0].mxu0
      %v475 = vpop.f32.mrb[0].mxu0
      %v476 = vadd.f32 %v284, %v475
      %v477 = vpop.f32.mrb[0].mxu0
      %478 = vmatprep.mubr.bf16.mxu0 0
      %479 = vmatmul.mubr.bf16.gmra.mrb[0].mxu0 %v327
      %v480 = vpop.f32.mrb[0].mxu0
      %v481 = vadd.f32 %v284, %v480
      %v482 = vpop.f32.mrb[0].mxu0
      %v483 = vpop.f32.mrb[0].mxu0
      %v484 = vadd.f32 %v284, %v483
      %v485 = vpop.f32.mrb[0].mxu0
      %486 = vmatprep.mubr.bf16.mxu0 0
      %487 = vmatmul.mubr.bf16.gmra.mrb[0].mxu0 %v330
      %v488 = vpop.f32.mrb[0].mxu0
      %v489 = vadd.f32 %v284, %v488
      %v490 = vpop.f32.mrb[0].mxu0
      %v491 = vpop.f32.mrb[0].mxu0
      %v492 = vadd.f32 %v284, %v491
      %v493 = vpop.f32.mrb[0].mxu0
      %494 = vmatprep.mubr.bf16.mxu0 0
      %495 = vmatmul.mubr.bf16.gmra.mrb[0].mxu0 %v333
      %v496 = vpop.f32.mrb[0].mxu0
      %v497 = vadd.f32 %v284, %v496
      %v498 = vpop.f32.mrb[0].mxu0
      %v499 = vpop.f32.mrb[0].mxu0
      %v500 = vadd.f32 %v284, %v499
      %v501 = vpop.f32.mrb[0].mxu0
      %502 = vdwg.mxu0
      %vm503 = vcmask 261120
      %v504 = vsel %vm503, %v377, 0.0
      %505 = vadd.xlane.f32.xlu0 %v504
      %v506 = vpop.xlane.xlu0 %505
      %v507 = vsel %vm503, %v380, 0.0
      %508 = vadd.xlane.f32.xlu0 %v507
      %v509 = vpop.xlane.xlu0 %508
      %v510 = vsel %vm503, %v385, 0.0
      %511 = vadd.xlane.f32.xlu0 %v510
      %v512 = vpop.xlane.xlu0 %511
      %v513 = vsel %vm503, %v388, 0.0
      %514 = vadd.xlane.f32.xlu0 %v513
      %v515 = vpop.xlane.xlu0 %514
      %v516 = vsel %vm503, %v393, 0.0
      %517 = vadd.xlane.f32.xlu0 %v516
      %v518 = vpop.xlane.xlu0 %517
      %v519 = vsel %vm503, %v396, 0.0
      %520 = vadd.xlane.f32.xlu0 %v519
      %v521 = vpop.xlane.xlu0 %520
      %v522 = vsel %vm503, %v401, 0.0
      %523 = vadd.xlane.f32.xlu0 %v522
      %v524 = vpop.xlane.xlu0 %523
      %v525 = vsel %vm503, %v404, 0.0
      %526 = vadd.xlane.f32.xlu0 %v525
      %v527 = vpop.xlane.xlu0 %526
      %v528 = vsel %vm503, %v409, 0.0
      %529 = vadd.xlane.f32.xlu0 %v528
      %v530 = vpop.xlane.xlu0 %529
      %v531 = vsel %vm503, %v412, 0.0
      %532 = vadd.xlane.f32.xlu0 %v531
      %v533 = vpop.xlane.xlu0 %532
      %v534 = vsel %vm503, %v417, 0.0
      %535 = vadd.xlane.f32.xlu0 %v534
      %v536 = vpop.xlane.xlu0 %535
      %v537 = vsel %vm503, %v420, 0.0
      %538 = vadd.xlane.f32.xlu0 %v537
      %v539 = vpop.xlane.xlu0 %538
      %v540 = vsel %vm503, %v425, 0.0
      %541 = vadd.xlane.f32.xlu0 %v540
      %v542 = vpop.xlane.xlu0 %541
      %v543 = vsel %vm503, %v428, 0.0
      %544 = vadd.xlane.f32.xlu0 %v543
      %v545 = vpop.xlane.xlu0 %544
      %v546 = vsel %vm503, %v433, 0.0
      %547 = vadd.xlane.f32.xlu0 %v546
      %v548 = vpop.xlane.xlu0 %547
      %v549 = vsel %vm503, %v436, 0.0
      %550 = vadd.xlane.f32.xlu0 %v549
      %v551 = vpop.xlane.xlu0 %550
      %v552 = vsel %vm503, %v441, 0.0
      %553 = vadd.xlane.f32.xlu0 %v552
      %v554 = vpop.xlane.xlu0 %553
      %v555 = vsel %vm503, %v444, 0.0
      %556 = vadd.xlane.f32.xlu0 %v555
      %v557 = vpop.xlane.xlu0 %556
      %v558 = vsel %vm503, %v449, 0.0
      %559 = vadd.xlane.f32.xlu0 %v558
      %v560 = vpop.xlane.xlu0 %559
      %v561 = vsel %vm503, %v452, 0.0
      %562 = vadd.xlane.f32.xlu0 %v561
      %v563 = vpop.xlane.xlu0 %562
      %v564 = vsel %vm503, %v457, 0.0
      %565 = vadd.xlane.f32.xlu0 %v564
      %v566 = vpop.xlane.xlu0 %565
      %v567 = vsel %vm503, %v460, 0.0
      %568 = vadd.xlane.f32.xlu0 %v567
      %v569 = vpop.xlane.xlu0 %568
      %v570 = vsel %vm503, %v465, 0.0
      %571 = vadd.xlane.f32.xlu0 %v570
      %v572 = vpop.xlane.xlu0 %571
      %v573 = vsel %vm503, %v468, 0.0
      %574 = vadd.xlane.f32.xlu0 %v573
      %v575 = vpop.xlane.xlu0 %574
      %v576 = vsel %vm503, %v473, 0.0
      %577 = vadd.xlane.f32.xlu0 %v576
      %v578 = vpop.xlane.xlu0 %577
      %v579 = vsel %vm503, %v476, 0.0
      %580 = vadd.xlane.f32.xlu0 %v579
      %v581 = vpop.xlane.xlu0 %580
      %v582 = vsel %vm503, %v481, 0.0
      %583 = vadd.xlane.f32.xlu0 %v582
      %v584 = vpop.xlane.xlu0 %583
      %v585 = vsel %vm503, %v484, 0.0
      %586 = vadd.xlane.f32.xlu0 %v585
      %v587 = vpop.xlane.xlu0 %586
      %v588 = vsel %vm503, %v489, 0.0
      %589 = vadd.xlane.f32.xlu0 %v588
      %v590 = vpop.xlane.xlu0 %589
      %v591 = vsel %vm503, %v492, 0.0
      %592 = vadd.xlane.f32.xlu0 %v591
      %v593 = vpop.xlane.xlu0 %592
      %v594 = vsel %vm503, %v497, 0.0
      %595 = vadd.xlane.f32.xlu0 %v594
      %v596 = vpop.xlane.xlu0 %595
      %v597 = vsel %vm503, %v500, 0.0
      %598 = vadd.xlane.f32.xlu0 %v597
      %v599 = vpop.xlane.xlu0 %598
      %v600 = vrcp.pop 32.0
      %v601 = vmul.f32 %v506, %v600
      %v602 = vmul.f32 %v509, %v600
      %v603 = vmul.f32 %v512, %v600
      %v604 = vmul.f32 %v515, %v600
      %v605 = vmul.f32 %v518, %v600
      %v606 = vmul.f32 %v521, %v600
      %v607 = vmul.f32 %v524, %v600
      %v608 = vmul.f32 %v527, %v600
      %v609 = vmul.f32 %v530, %v600
      %v610 = vmul.f32 %v533, %v600
      %v611 = vmul.f32 %v536, %v600
      %v612 = vmul.f32 %v539, %v600
      %v613 = vmul.f32 %v542, %v600
      %v614 = vmul.f32 %v545, %v600
      %v615 = vmul.f32 %v548, %v600
      %v616 = vmul.f32 %v551, %v600
      %v617 = vmul.f32 %v554, %v600
      %v618 = vmul.f32 %v557, %v600
      %v619 = vmul.f32 %v560, %v600
      %v620 = vmul.f32 %v563, %v600
      %v621 = vmul.f32 %v566, %v600
      %v622 = vmul.f32 %v569, %v600
      %v623 = vmul.f32 %v572, %v600
      %v624 = vmul.f32 %v575, %v600
      %v625 = vmul.f32 %v578, %v600
      %v626 = vmul.f32 %v581, %v600
      %v627 = vmul.f32 %v584, %v600
      %v628 = vmul.f32 %v587, %v600
      %v629 = vmul.f32 %v590, %v600
      %v630 = vmul.f32 %v593, %v600
      %v631 = vmul.f32 %v596, %v600
      %v632 = vmul.f32 %v599, %v600
      %v633 = vsub.f32 %v377, %v601
      %v634 = vsub.f32 %v380, %v602
      %v635 = vsub.f32 %v385, %v603
      %v636 = vsub.f32 %v388, %v604
      %v637 = vsub.f32 %v393, %v605
      %v638 = vsub.f32 %v396, %v606
      %v639 = vsub.f32 %v401, %v607
      %v640 = vsub.f32 %v404, %v608
      %v641 = vsub.f32 %v409, %v609
      %v642 = vsub.f32 %v412, %v610
      %v643 = vsub.f32 %v417, %v611
      %v644 = vsub.f32 %v420, %v612
      %v645 = vsub.f32 %v425, %v613
      %v646 = vsub.f32 %v428, %v614
      %v647 = vsub.f32 %v433, %v615
      %v648 = vsub.f32 %v436, %v616
      %v649 = vsub.f32 %v441, %v617
      %v650 = vsub.f32 %v444, %v618
      %v651 = vsub.f32 %v449, %v619
      %v652 = vsub.f32 %v452, %v620
      %v653 = vsub.f32 %v457, %v621
      %v654 = vsub.f32 %v460, %v622
      %v655 = vsub.f32 %v465, %v623
      %v656 = vsub.f32 %v468, %v624
      %v657 = vsub.f32 %v473, %v625
      %v658 = vsub.f32 %v476, %v626
      %v659 = vsub.f32 %v481, %v627
      %v660 = vsub.f32 %v484, %v628
      %v661 = vsub.f32 %v489, %v629
      %v662 = vsub.f32 %v492, %v630
      %v663 = vsub.f32 %v497, %v631
      %v664 = vsub.f32 %v500, %v632
      %v665 = vmul.f32 %v633, %v633
      %v666 = vmul.f32 %v634, %v634
      %v667 = vmul.f32 %v635, %v635
      %v668 = vmul.f32 %v636, %v636
      %v669 = vmul.f32 %v637, %v637
      %v670 = vmul.f32 %v638, %v638
      %v671 = vmul.f32 %v639, %v639
      %v672 = vmul.f32 %v640, %v640
      %v673 = vmul.f32 %v641, %v641
      %v674 = vmul.f32 %v642, %v642
      %v675 = vmul.f32 %v643, %v643
      %v676 = vmul.f32 %v644, %v644
      %v677 = vmul.f32 %v645, %v645
      %v678 = vmul.f32 %v646, %v646
      %v679 = vmul.f32 %v647, %v647
      %v680 = vmul.f32 %v648, %v648
      %v681 = vmul.f32 %v649, %v649
      %v682 = vmul.f32 %v650, %v650
      %v683 = vmul.f32 %v651, %v651
      %v684 = vmul.f32 %v652, %v652
      %v685 = vmul.f32 %v653, %v653
      %v686 = vmul.f32 %v654, %v654
      %v687 = vmul.f32 %v655, %v655
      %v688 = vmul.f32 %v656, %v656
      %v689 = vmul.f32 %v657, %v657
      %v690 = vmul.f32 %v658, %v658
      %v691 = vmul.f32 %v659, %v659
      %v692 = vmul.f32 %v660, %v660
      %v693 = vmul.f32 %v661, %v661
      %v694 = vmul.f32 %v662, %v662
      %v695 = vmul.f32 %v663, %v663
      %v696 = vmul.f32 %v664, %v664
      %v697 = vsel %vm503, %v665, 0.0
      %698 = vadd.xlane.f32.xlu0 %v697
      %v699 = vpop.xlane.xlu0 %698
      %v700 = vsel %vm503, %v666, 0.0
      %701 = vadd.xlane.f32.xlu0 %v700
      %v702 = vpop.xlane.xlu0 %701
      %v703 = vsel %vm503, %v667, 0.0
      %704 = vadd.xlane.f32.xlu0 %v703
      %v705 = vpop.xlane.xlu0 %704
      %v706 = vsel %vm503, %v668, 0.0
      %707 = vadd.xlane.f32.xlu0 %v706
      %v708 = vpop.xlane.xlu0 %707
      %v709 = vsel %vm503, %v669, 0.0
      %710 = vadd.xlane.f32.xlu0 %v709
      %v711 = vpop.xlane.xlu0 %710
      %v712 = vsel %vm503, %v670, 0.0
      %713 = vadd.xlane.f32.xlu0 %v712
      %v714 = vpop.xlane.xlu0 %713
      %v715 = vsel %vm503, %v671, 0.0
      %716 = vadd.xlane.f32.xlu0 %v715
      %v717 = vpop.xlane.xlu0 %716
      %v718 = vsel %vm503, %v672, 0.0
      %719 = vadd.xlane.f32.xlu0 %v718
      %v720 = vpop.xlane.xlu0 %719
      %v721 = vsel %vm503, %v673, 0.0
      %722 = vadd.xlane.f32.xlu0 %v721
      %v723 = vpop.xlane.xlu0 %722
      %v724 = vsel %vm503, %v674, 0.0
      %725 = vadd.xlane.f32.xlu0 %v724
      %v726 = vpop.xlane.xlu0 %725
      %v727 = vsel %vm503, %v675, 0.0
      %728 = vadd.xlane.f32.xlu0 %v727
      %v729 = vpop.xlane.xlu0 %728
      %v730 = vsel %vm503, %v676, 0.0
      %731 = vadd.xlane.f32.xlu0 %v730
      %v732 = vpop.xlane.xlu0 %731
      %v733 = vsel %vm503, %v677, 0.0
      %734 = vadd.xlane.f32.xlu0 %v733
      %v735 = vpop.xlane.xlu0 %734
      %v736 = vsel %vm503, %v678, 0.0
      %737 = vadd.xlane.f32.xlu0 %v736
      %v738 = vpop.xlane.xlu0 %737
      %v739 = vsel %vm503, %v679, 0.0
      %740 = vadd.xlane.f32.xlu0 %v739
      %v741 = vpop.xlane.xlu0 %740
      %v742 = vsel %vm503, %v680, 0.0
      %743 = vadd.xlane.f32.xlu0 %v742
      %v744 = vpop.xlane.xlu0 %743
      %v745 = vsel %vm503, %v681, 0.0
      %746 = vadd.xlane.f32.xlu0 %v745
      %v747 = vpop.xlane.xlu0 %746
      %v748 = vsel %vm503, %v682, 0.0
      %749 = vadd.xlane.f32.xlu0 %v748
      %v750 = vpop.xlane.xlu0 %749
      %v751 = vsel %vm503, %v683, 0.0
      %752 = vadd.xlane.f32.xlu0 %v751
      %v753 = vpop.xlane.xlu0 %752
      %v754 = vsel %vm503, %v684, 0.0
      %755 = vadd.xlane.f32.xlu0 %v754
      %v756 = vpop.xlane.xlu0 %755
      %v757 = vsel %vm503, %v685, 0.0
      %758 = vadd.xlane.f32.xlu0 %v757
      %v759 = vpop.xlane.xlu0 %758
      %v760 = vsel %vm503, %v686, 0.0
      %761 = vadd.xlane.f32.xlu0 %v760
      %v762 = vpop.xlane.xlu0 %761
      %v763 = vsel %vm503, %v687, 0.0
      %764 = vadd.xlane.f32.xlu0 %v763
      %v765 = vpop.xlane.xlu0 %764
      %v766 = vsel %vm503, %v688, 0.0
      %767 = vadd.xlane.f32.xlu0 %v766
      %v768 = vpop.xlane.xlu0 %767
      %v769 = vsel %vm503, %v689, 0.0
      %770 = vadd.xlane.f32.xlu0 %v769
      %v771 = vpop.xlane.xlu0 %770
      %v772 = vsel %vm503, %v690, 0.0
      %773 = vadd.xlane.f32.xlu0 %v772
      %v774 = vpop.xlane.xlu0 %773
      %v775 = vsel %vm503, %v691, 0.0
      %776 = vadd.xlane.f32.xlu0 %v775
      %v777 = vpop.xlane.xlu0 %776
      %v778 = vsel %vm503, %v692, 0.0
      %779 = vadd.xlane.f32.xlu0 %v778
      %v780 = vpop.xlane.xlu0 %779
      %v781 = vsel %vm503, %v693, 0.0
      %782 = vadd.xlane.f32.xlu0 %v781
      %v783 = vpop.xlane.xlu0 %782
      %v784 = vsel %vm503, %v694, 0.0
      %785 = vadd.xlane.f32.xlu0 %v784
      %v786 = vpop.xlane.xlu0 %785
      %v787 = vsel %vm503, %v695, 0.0
      %788 = vadd.xlane.f32.xlu0 %v787
      %v789 = vpop.xlane.xlu0 %788
      %v790 = vsel %vm503, %v696, 0.0
      %791 = vadd.xlane.f32.xlu0 %v790
      %v792 = vpop.xlane.xlu0 %791
      %v793 = vmul.f32 %v699, %v600
      %v794 = vmul.f32 %v702, %v600
      %v795 = vmul.f32 %v705, %v600
      %v796 = vmul.f32 %v708, %v600
      %v797 = vmul.f32 %v711, %v600
      %v798 = vmul.f32 %v714, %v600
      %v799 = vmul.f32 %v717, %v600
      %v800 = vmul.f32 %v720, %v600
      %v801 = vmul.f32 %v723, %v600
      %v802 = vmul.f32 %v726, %v600
      %v803 = vmul.f32 %v729, %v600
      %v804 = vmul.f32 %v732, %v600
      %v805 = vmul.f32 %v735, %v600
      %v806 = vmul.f32 %v738, %v600
      %v807 = vmul.f32 %v741, %v600
      %v808 = vmul.f32 %v744, %v600
      %v809 = vmul.f32 %v747, %v600
      %v810 = vmul.f32 %v750, %v600
      %v811 = vmul.f32 %v753, %v600
      %v812 = vmul.f32 %v756, %v600
      %v813 = vmul.f32 %v759, %v600
      %v814 = vmul.f32 %v762, %v600
      %v815 = vmul.f32 %v765, %v600
      %v816 = vmul.f32 %v768, %v600
      %v817 = vmul.f32 %v771, %v600
      %v818 = vmul.f32 %v774, %v600
      %v819 = vmul.f32 %v777, %v600
      %v820 = vmul.f32 %v780, %v600
      %v821 = vmul.f32 %v783, %v600
      %v822 = vmul.f32 %v786, %v600
      %v823 = vmul.f32 %v789, %v600
      %v824 = vmul.f32 %v792, %v600
      %v825 = vadd.f32 %v793, 1e-05
      %v826 = vadd.f32 %v794, 1e-05
      %v827 = vadd.f32 %v795, 1e-05
      %v828 = vadd.f32 %v796, 1e-05
      %v829 = vadd.f32 %v797, 1e-05
      %v830 = vadd.f32 %v798, 1e-05
      %v831 = vadd.f32 %v799, 1e-05
      %v832 = vadd.f32 %v800, 1e-05
      %v833 = vadd.f32 %v801, 1e-05
      %v834 = vadd.f32 %v802, 1e-05
      %v835 = vadd.f32 %v803, 1e-05
      %v836 = vadd.f32 %v804, 1e-05
      %v837 = vadd.f32 %v805, 1e-05
      %v838 = vadd.f32 %v806, 1e-05
      %v839 = vadd.f32 %v807, 1e-05
      %v840 = vadd.f32 %v808, 1e-05
      %v841 = vadd.f32 %v809, 1e-05
      %v842 = vadd.f32 %v810, 1e-05
      %v843 = vadd.f32 %v811, 1e-05
      %v844 = vadd.f32 %v812, 1e-05
      %v845 = vadd.f32 %v813, 1e-05
      %v846 = vadd.f32 %v814, 1e-05
      %v847 = vadd.f32 %v815, 1e-05
      %v848 = vadd.f32 %v816, 1e-05
      %v849 = vadd.f32 %v817, 1e-05
      %v850 = vadd.f32 %v818, 1e-05
      %v851 = vadd.f32 %v819, 1e-05
      %v852 = vadd.f32 %v820, 1e-05
      %v853 = vadd.f32 %v821, 1e-05
      %v854 = vadd.f32 %v822, 1e-05
      %v855 = vadd.f32 %v823, 1e-05
      %v856 = vadd.f32 %v824, 1e-05
      %v857 = vrsqrt.pop %v825
      %v858 = vrsqrt.pop %v826
      %v859 = vrsqrt.pop %v827
      %v860 = vrsqrt.pop %v828
      %v861 = vrsqrt.pop %v829
      %v862 = vrsqrt.pop %v830
      %v863 = vrsqrt.pop %v831
      %v864 = vrsqrt.pop %v832
      %v865 = vrsqrt.pop %v833
      %v866 = vrsqrt.pop %v834
      %v867 = vrsqrt.pop %v835
      %v868 = vrsqrt.pop %v836
      %v869 = vrsqrt.pop %v837
      %v870 = vrsqrt.pop %v838
      %v871 = vrsqrt.pop %v839
      %v872 = vrsqrt.pop %v840
      %v873 = vrsqrt.pop %v841
      %v874 = vrsqrt.pop %v842
      %v875 = vrsqrt.pop %v843
      %v876 = vrsqrt.pop %v844
      %v877 = vrsqrt.pop %v845
      %v878 = vrsqrt.pop %v846
      %v879 = vrsqrt.pop %v847
      %v880 = vrsqrt.pop %v848
      %v881 = vrsqrt.pop %v849
      %v882 = vrsqrt.pop %v850
      %v883 = vrsqrt.pop %v851
      %v884 = vrsqrt.pop %v852
      %v885 = vrsqrt.pop %v853
      %v886 = vrsqrt.pop %v854
      %v887 = vrsqrt.pop %v855
      %v888 = vrsqrt.pop %v856
      %v889 = vmul.f32 %v633, %v857
      %v890 = vmul.f32 %v634, %v858
      %v891 = vmul.f32 %v635, %v859
      %v892 = vmul.f32 %v636, %v860
      %v893 = vmul.f32 %v637, %v861
      %v894 = vmul.f32 %v638, %v862
      %v895 = vmul.f32 %v639, %v863
      %v896 = vmul.f32 %v640, %v864
      %v897 = vmul.f32 %v641, %v865
      %v898 = vmul.f32 %v642, %v866
      %v899 = vmul.f32 %v643, %v867
      %v900 = vmul.f32 %v644, %v868
      %v901 = vmul.f32 %v645, %v869
      %v902 = vmul.f32 %v646, %v870
      %v903 = vmul.f32 %v647, %v871
      %v904 = vmul.f32 %v648, %v872
      %v905 = vmul.f32 %v649, %v873
      %v906 = vmul.f32 %v650, %v874
      %v907 = vmul.f32 %v651, %v875
      %v908 = vmul.f32 %v652, %v876
      %v909 = vmul.f32 %v653, %v877
      %v910 = vmul.f32 %v654, %v878
      %v911 = vmul.f32 %v655, %v879
      %v912 = vmul.f32 %v656, %v880
      %v913 = vmul.f32 %v657, %v881
      %v914 = vmul.f32 %v658, %v882
      %v915 = vmul.f32 %v659, %v883
      %v916 = vmul.f32 %v660, %v884
      %v917 = vmul.f32 %v661, %v885
      %v918 = vmul.f32 %v662, %v886
      %v919 = vmul.f32 %v663, %v887
      %v920 = vmul.f32 %v664, %v888
      %v921 = vld [vmem:[%s3] sm:$0x1]
      %v923 = vlaneseq
      %v924 = vshrl.u32 %v923, 7
      %v925 = vsub.s32 0, %v924
      %v926 = vrot.slane %v921, %v925
      %v928 = vmul.f32 %v889, %v926
      %v929 = vmul.f32 %v890, %v926
      %v930 = vmul.f32 %v891, %v926
      %v931 = vmul.f32 %v892, %v926
      %v932 = vmul.f32 %v893, %v926
      %v933 = vmul.f32 %v894, %v926
      %v934 = vmul.f32 %v895, %v926
      %v935 = vmul.f32 %v896, %v926
      %v936 = vmul.f32 %v897, %v926
      %v937 = vmul.f32 %v898, %v926
      %v938 = vmul.f32 %v899, %v926
      %v939 = vmul.f32 %v900, %v926
      %v940 = vmul.f32 %v901, %v926
      %v941 = vmul.f32 %v902, %v926
      %v942 = vmul.f32 %v903, %v926
      %v943 = vmul.f32 %v904, %v926
      %v944 = vmul.f32 %v905, %v926
      %v945 = vmul.f32 %v906, %v926
      %v946 = vmul.f32 %v907, %v926
      %v947 = vmul.f32 %v908, %v926
      %v948 = vmul.f32 %v909, %v926
      %v949 = vmul.f32 %v910, %v926
      %v950 = vmul.f32 %v911, %v926
      %v951 = vmul.f32 %v912, %v926
      %v952 = vmul.f32 %v913, %v926
      %v953 = vmul.f32 %v914, %v926
      %v954 = vmul.f32 %v915, %v926
      %v955 = vmul.f32 %v916, %v926
      %v956 = vmul.f32 %v917, %v926
      %v957 = vmul.f32 %v918, %v926
      %v958 = vmul.f32 %v919, %v926
      %v959 = vmul.f32 %v920, %v926
      %v960 = vld [vmem:[%s4] sm:$0x1]
      %v962 = vlaneseq
      %v963 = vshrl.u32 %v962, 7
      %v964 = vsub.s32 0, %v963
      %v965 = vrot.slane %v960, %v964
      %v967 = vadd.f32 %v928, %v965
      %v968 = vadd.f32 %v929, %v965
      %v969 = vadd.f32 %v930, %v965
      %v970 = vadd.f32 %v931, %v965
      %v971 = vadd.f32 %v932, %v965
      %v972 = vadd.f32 %v933, %v965
      %v973 = vadd.f32 %v934, %v965
      %v974 = vadd.f32 %v935, %v965
      %v975 = vadd.f32 %v936, %v965
      %v976 = vadd.f32 %v937, %v965
      %v977 = vadd.f32 %v938, %v965
      %v978 = vadd.f32 %v939, %v965
      %v979 = vadd.f32 %v940, %v965
      %v980 = vadd.f32 %v941, %v965
      %v981 = vadd.f32 %v942, %v965
      %v982 = vadd.f32 %v943, %v965
      %v983 = vadd.f32 %v944, %v965
      %v984 = vadd.f32 %v945, %v965
      %v985 = vadd.f32 %v946, %v965
      %v986 = vadd.f32 %v947, %v965
      %v987 = vadd.f32 %v948, %v965
      %v988 = vadd.f32 %v949, %v965
      %v989 = vadd.f32 %v950, %v965
      %v990 = vadd.f32 %v951, %v965
      %v991 = vadd.f32 %v952, %v965
      %v992 = vadd.f32 %v953, %v965
      %v993 = vadd.f32 %v954, %v965
      %v994 = vadd.f32 %v955, %v965
      %v995 = vadd.f32 %v956, %v965
      %v996 = vadd.f32 %v957, %v965
      %v997 = vadd.f32 %v958, %v965
      %v998 = vadd.f32 %v959, %v965
      %999 = vst.msk [vmem:[%s226] sm:$0xff] %vm503, %v967
      %1000 = vst.msk [vmem:[%s226 + $0x8] sm:$0xff] %vm503, %v968
      %1001 = vst.msk [vmem:[%s226 + $0x10] sm:$0xff] %vm503, %v969
      %1002 = vst.msk [vmem:[%s226 + $0x18] sm:$0xff] %vm503, %v970
      %1003 = vst.msk [vmem:[%s226 + $0x20] sm:$0xff] %vm503, %v971
      %1004 = vst.msk [vmem:[%s226 + $0x28] sm:$0xff] %vm503, %v972
      %1005 = vst.msk [vmem:[%s226 + $0x30] sm:$0xff] %vm503, %v973
      %1006 = vst.msk [vmem:[%s226 + $0x38] sm:$0xff] %vm503, %v974
      %1007 = vst.msk [vmem:[%s226 + $0x40] sm:$0xff] %vm503, %v975
      %1008 = vst.msk [vmem:[%s226 + $0x48] sm:$0xff] %vm503, %v976
      %1009 = vst.msk [vmem:[%s226 + $0x50] sm:$0xff] %vm503, %v977
      %1010 = vst.msk [vmem:[%s226 + $0x58] sm:$0xff] %vm503, %v978
      %1011 = vst.msk [vmem:[%s226 + $0x60] sm:$0xff] %vm503, %v979
      %1012 = vst.msk [vmem:[%s226 + $0x68] sm:$0xff] %vm503, %v980
      %1013 = vst.msk [vmem:[%s226 + $0x70] sm:$0xff] %vm503, %v981
      %1014 = vst.msk [vmem:[%s226 + $0x78] sm:$0xff] %vm503, %v982
      %1015 = vst.msk [vmem:[%s226 + $0x80] sm:$0xff] %vm503, %v983
      %1016 = vst.msk [vmem:[%s226 + $0x88] sm:$0xff] %vm503, %v984
      %1017 = vst.msk [vmem:[%s226 + $0x90] sm:$0xff] %vm503, %v985
      %1018 = vst.msk [vmem:[%s226 + $0x98] sm:$0xff] %vm503, %v986
      %1019 = vst.msk [vmem:[%s226 + $0xa0] sm:$0xff] %vm503, %v987
      %1020 = vst.msk [vmem:[%s226 + $0xa8] sm:$0xff] %vm503, %v988
      %1021 = vst.msk [vmem:[%s226 + $0xb0] sm:$0xff] %vm503, %v989
      %1022 = vst.msk [vmem:[%s226 + $0xb8] sm:$0xff] %vm503, %v990
      %1023 = vst.msk [vmem:[%s226 + $0xc0] sm:$0xff] %vm503, %v991
      %1024 = vst.msk [vmem:[%s226 + $0xc8] sm:$0xff] %vm503, %v992
      %1025 = vst.msk [vmem:[%s226 + $0xd0] sm:$0xff] %vm503, %v993
      %1026 = vst.msk [vmem:[%s226 + $0xd8] sm:$0xff] %vm503, %v994
      %1027 = vst.msk [vmem:[%s226 + $0xe0] sm:$0xff] %vm503, %v995
      %1028 = vst.msk [vmem:[%s226 + $0xe8] sm:$0xff] %vm503, %v996
      %1029 = vst.msk [vmem:[%s226 + $0xf0] sm:$0xff] %vm503, %v997
      %1030 = vst.msk [vmem:[%s226 + $0xf8] sm:$0xff] %vm503, %v998
      %s1031 = smul.u32 32, %s16
      %p1032 = scmp.lt.s32.totalorder %s1031, 63
      %s1033 = scalar_select %p1032, %s1031, 63
      %s1034 = smul.addr %s1033, 8
      %s1035 = scalar_lea.vmem %s5, %s1034
      // Predicated region
      $region41: #{tpu_custom_call.1} parent=39 // pred_check
        %p1036 = pneg %p144
      $region42: #{tpu_custom_call.1} parent=39 // pred_check_branch
        %1038 = sbr.rel (%p1036) target = $region44
      $region43: #{tpu_custom_call.1} parent=39 // pred_region
        %s1039 = smul.u32 32, %s16
      $region44: #{tpu_custom_call.1} parent=39 // pred_fallthru
        _
    $region40: #{tpu_custom_call.1} parent=5 // pred_fallthru
      _
    %p1040 = scmp.le.s32.totalorder 2, %s11
    // Predicated region
    $region45: #{tpu_custom_call.1} parent=5 // pred_check
      %p1041 = pneg %p1040
    $region46: #{tpu_custom_call.1} parent=5 // pred_check_branch
      %1043 = sbr.rel (%p1041) target = $region48
    $region47: #{tpu_custom_call.1} parent=5 // pred_region
      %s1044 = ssub.s32 %s11, 2
      // Predicated region
      $region49: #{tpu_custom_call.1} parent=47 // pred_check
        %p1045 = pneg %p150
      $region50: #{tpu_custom_call.1} parent=47 // pred_check_branch
        %1047 = sbr.rel (%p1045) target = $region52
      $region51: #{tpu_custom_call.1} parent=47 // pred_region
        %s1048 = smul.u32 32, %s17
        %p1049 = scmp.lt.s32.totalorder %s1048, 63
        %s1050 = scalar_select %p1049, %s1048, 63
        %s1051 = smul.addr %s1050, 8
        %s1052 = scalar_lea.vmem %s5, %s1051
      $region52: #{tpu_custom_call.1} parent=47 // pred_fallthru
        _
    $region48: #{tpu_custom_call.1} parent=5 // pred_fallthru
      _
  $region6: #{tpu_custom_call.1} parent=0 // loop_footer
    %s15 = sadd.s32 1, %s11
  $region7: #{tpu_custom_call.1} parent=0 // loop_footer_branch
    %10 = sbr.rel target = $region3
  $region8: #{tpu_custom_call.1} parent=0 // loop_exit
    _

</llo_original>
